<compile_context>
chip_gen: v6e
topology: v6e:2x2x1
jax: 0.10.0
libtpu: 0.0.40
codegen_flags: <defaults>
</compile_context>

<pallas_src>
import functools

import jax
import jax.numpy as jnp
from jax.experimental import pallas as pl
from jax.experimental.pallas import tpu as pltpu


def _round_up(x, m):
    return (x + m - 1) // m * m


def _vmem_capacity_bytes():
    """Physical per-core VMEM; conservative fallback if the query is unavailable."""
    try:
        info = pltpu.get_tpu_info()
        cap = getattr(info, "vmem_capacity_bytes", None)
        if cap:
            return int(cap)
    except Exception:
        pass
    return 64 << 20  # v7x per-TensorCore VMEM (most restrictive generation)


def _choose_tile(hw, num_classes, itemsize, vmem_cap):
    """Spatial tile T (elements), a multiple of 2048 (=> S=T/128 multiple of 16)."""
    # Per-spatial-element resident bytes: double-buffered preds+targets blocks
    # plus a conservative estimate of the kernel's f32 intermediates.
    per_elem = 2 * (num_classes * itemsize + 4) + 4 * (2 * num_classes + 12)
    budget = max(vmem_cap - (8 << 20), 8 << 20)
    t = budget // per_elem
    # Diminishing returns past a few-MiB preds block (per-step overhead ~0.35us).
    t = min(t, (4 << 20) // max(num_classes * itemsize, 1))
    t = max(2048, (t // 2048) * 2048)
    t = min(t, _round_up(hw, 2048))
    return int(t)


def _dice_kernel(preds_ref, targets_ref, out_ref,
                 inter_acc, pred_acc, tgt_acc,
                 *, num_classes, apply_softmax, smooth, pad_correction):
    h = pl.program_id(1)
    n_tiles = pl.num_programs(1)

    @pl.when(h == 0)
    def _():
        inter_acc[...] = jnp.zeros_like(inter_acc)
        pred_acc[...] = jnp.zeros_like(pred_acc)
        tgt_acc[...] = jnp.zeros_like(tgt_acc)

    t = targets_ref[0, 0]  # (S, 128) int32

    # Dense (S, 128) class planes; cast AFTER load so bf16 logits stream as bf16.
    planes = [preds_ref[0, c].astype(jnp.float32) for c in range(num_classes)]

    if apply_softmax:
        # Softmax over classes via the unrolled plane list: pure elementwise VPU
        # maximum/add (no cross-sublane reduces), one reciprocal per pixel.
        m = planes[0]
        for c in range(1, num_classes):
            m = jnp.maximum(m, planes[c])
        exps = [jnp.exp(p - m) for p in planes]
        denom = exps[0]
        for c in range(1, num_classes):
            denom = denom + exps[c]
        inv = pl.reciprocal(denom)  # approx=False: keeps the tight self-test tolerance
        planes = [e * inv for e in exps]
    # NOTE: C == 1 path applies no activation, matching the PyTorch module exactly.

    for c in range(num_classes):
        p = planes[c]
        match = t == c                       # compare vs scalar constant (no iota)
        inter = jnp.where(match, p, 0.0)
        tgt = match.astype(jnp.float32)
        # Sublane-axis sums decompose into vreg adds (VPU) plus one tiny in-vreg
        # step; the expensive cross-lane reduce is deferred to the finalize.
        inter_acc[c] += jnp.sum(inter, axis=0, keepdims=True)   # (1, 128)
        pred_acc[c] += jnp.sum(p, axis=0, keepdims=True)        # (1, 128)
        tgt_acc[c] += jnp.sum(tgt, axis=0, keepdims=True)       # (1, 128)

    @pl.when(h == n_tiles - 1)
    def _():
        inter_s = jnp.sum(inter_acc[...], axis=-1)   # (C, 1): single cross-lane reduce
        pred_s = jnp.sum(pred_acc[...], axis=-1)
        tgt_s = jnp.sum(tgt_acc[...], axis=-1)
        if pad_correction != 0.0:
            # Padded pixels (zero logits) contributed exactly 1/C per class on the
            # softmax path; remove that constant once per batch element.
            pred_s = pred_s - pad_correction
        dice = (2.0 * inter_s + smooth) / (pred_s + tgt_s + smooth)   # (C, 1)
        out_ref[...] = dice[None]                                      # (1, C, 1)


def dice_per_batch_class(preds_l, targets_l, *, tile, apply_softmax, smooth,
                         pad_correction, vmem_cap):
    """preds_l: [B, C, HW_pad/128, 128], targets_l: [B, 1, HW_pad/128, 128] i32
    -> dice [B, C] f32."""
    B, C, n_rows, lanes = preds_l.shape
    assert lanes == 128
    S = tile // 128
    assert n_rows % S == 0
    n_tiles = n_rows // S

    kernel = functools.partial(
        _dice_kernel,
        num_classes=C,
        apply_softmax=apply_softmax,
        smooth=float(smooth),
        pad_correction=float(pad_correction),
    )

    vmem_limit = int(min(max(vmem_cap, 32 << 20), 128 << 20))

    out = pl.pallas_call(
        kernel,
        out_shape=jax.ShapeDtypeStruct((B, C, 1), jnp.float32),
        grid_spec=pltpu.PrefetchScalarGridSpec(
            num_scalar_prefetch=0,
            grid=(B, n_tiles),
            in_specs=[
                pl.BlockSpec((1, C, S, 128), lambda b, h: (b, 0, h, 0)),
                pl.BlockSpec((1, 1, S, 128), lambda b, h: (b, 0, h, 0)),
            ],
            # Per-batch output block; written only on the last HW tile.
            out_specs=pl.BlockSpec((1, C, 1), lambda b, h: (b, 0, 0)),
            scratch_shapes=[
                pltpu.VMEM((C, 1, 128), jnp.float32),   # intersection lane-partials
                pltpu.VMEM((C, 1, 128), jnp.float32),   # pred-sum lane-partials
                pltpu.VMEM((C, 1, 128), jnp.float32),   # target-sum lane-partials
            ],
        ),
        compiler_params=pltpu.CompilerParams(
            dimension_semantics=("parallel", "arbitrary"),
            vmem_limit_bytes=vmem_limit,
        ),
        # Default 2-deep pipelining is kept: each byte is streamed once, so deeper
        # buffering would only burn VMEM (the scarce resource on v7x).
    )(preds_l, targets_l)
    return out[:, :, 0]


def dice_loss(preds, targets, ignore_index=None, smooth=1e-6):
    """Matches DiceLoss.forward: preds [B,C,H,W] logits, targets [B,H,W] indices."""
    B, C, H, W = preds.shape
    HW = H * W
    itemsize = jnp.dtype(preds.dtype).itemsize

    vmem_phys = _vmem_capacity_bytes()
    vmem_cap = (vmem_phys // 4) * 3          # ~48 MiB on v7x, ~96 MiB on v5e/v6e

    T = _choose_tile(HW, C, itemsize, vmem_cap)
    HW_pad = _round_up(HW, T)

    # NCHW -> [B, C, HW] is a free reshape; keep the logits' native dtype (bf16 ok).
    preds_l = preds.reshape(B, C, HW)
    # Targets padded with the out-of-range class C so padded pixels never match.
    # TODO(synk): on v5e, store targets as int8 in HBM (widen after load) to cut
    # another ~15% of HBM traffic.
    targets_l = targets.astype(jnp.int32).reshape(B, 1, HW)
    if HW_pad != HW:
        pad = HW_pad - HW
        preds_l = jnp.pad(preds_l, ((0, 0), (0, 0), (0, pad)))
        targets_l = jnp.pad(targets_l, ((0, 0), (0, 0), (0, pad)), constant_values=C)
    preds_l = preds_l.reshape(B, C, HW_pad // 128, 128)
    targets_l = targets_l.reshape(B, 1, HW_pad // 128, 128)

    apply_softmax = C > 1
    pad_correction = (HW_pad - HW) / C if apply_softmax else 0.0

    # TODO(synk): for B == 1 on v7x, split the HW axis over a second "parallel"
    # grid axis (per-core partial inter/pred/tgt sums combined in this epilogue)
    # so both TensorCores are used.
    dice_bc = dice_per_batch_class(
        preds_l, targets_l, tile=T, apply_softmax=apply_softmax, smooth=smooth,
        pad_correction=pad_correction, vmem_cap=vmem_cap,
    )  # [B, C]

    # Tiny scalar epilogue in plain JAX (mean over batch, masked mean over classes).
    per_class_loss = 1.0 - jnp.mean(dice_bc, axis=0)  # [C]
    if ignore_index is not None:
        mask = (jnp.arange(C) != ignore_index).astype(jnp.float32)
    else:
        mask = jnp.ones((C,), dtype=jnp.float32)
    count = jnp.sum(mask)
    loss = jnp.where(
        count > 0.0,
        jnp.sum(per_class_loss * mask) / jnp.maximum(count, 1.0),
        jnp.float32(1.0),
    )
    return loss


def _dice_loss_ref(preds, targets, ignore_index=None, smooth=1e-6):
    """Pure-JAX reference mirroring the PyTorch code, for a silent sanity check."""
    B, C, H, W = preds.shape
    p = preds.astype(jnp.float32)
    if C > 1:
        p = jax.nn.softmax(p, axis=1)
    total = 0.0
    count = 0
    for ci in range(C):
        if ignore_index is not None and ci == ignore_index:
            continue
        pc = p[:, ci, :, :]
        tc = (targets == ci).astype(jnp.float32)
        inter = jnp.sum(pc * tc, axis=(1, 2))
        union = jnp.sum(pc, axis=(1, 2)) + jnp.sum(tc, axis=(1, 2))
        dice = (2.0 * inter + smooth) / (union + smooth)
        total += 1.0 - jnp.mean(dice)
        count += 1
    return total / count if count > 0 else jnp.float32(1.0)


if __name__ == "__main__":
    # Case 1: multi-class; padded region has exactly-representable 1/C softmax.
    B, C, H, W = 2, 4, 16, 16
    key = jax.random.PRNGKey(0)
    kp, kt = jax.random.split(key)
    preds = jax.random.normal(kp, (B, C, H, W), dtype=jnp.float32)
    targets = jax.random.randint(kt, (B, H, W), 0, C, dtype=jnp.int32)

    loss = jax.block_until_ready(dice_loss(preds, targets, ignore_index=None, smooth=1e-6))
    ref = jax.block_until_ready(_dice_loss_ref(preds, targets, ignore_index=None, smooth=1e-6))
    assert jnp.allclose(loss, ref, atol=1e-5, rtol=1e-4), (loss, ref)

    # Case 2: odd spatial size (exercises the padded-tail correction) + ignore_index.
    B2, C2, H2, W2 = 2, 3, 10, 10
    kp2, kt2 = jax.random.split(jax.random.PRNGKey(1))
    preds2 = jax.random.normal(kp2, (B2, C2, H2, W2), dtype=jnp.float32)
    targets2 = jax.random.randint(kt2, (B2, H2, W2), 0, C2, dtype=jnp.int32)

    loss2 = jax.block_until_ready(dice_loss(preds2, targets2, ignore_index=0, smooth=1e-6))
    ref2 = jax.block_until_ready(_dice_loss_ref(preds2, targets2, ignore_index=0, smooth=1e-6))
    assert jnp.allclose(loss2, ref2, atol=1e-5, rtol=1e-4), (loss2, ref2)

    print("KERNEL_OK")
</pallas_src>

<mosaic_0001>
module attributes {stable_mosaic.version = 11 : i64} {
  func.func @_dice_kernel(%arg0: i32, %arg1: i32, %arg2: memref<1x4x16x128xf32, #tpu.memory_space<vmem>>, %arg3: memref<1x1x16x128xi32, #tpu.memory_space<vmem>>, %arg4: memref<1x4x1xf32, #tpu.memory_space<vmem>>, %arg5: memref<4x1x128xf32, #tpu.memory_space<vmem>>, %arg6: memref<4x1x128xf32, #tpu.memory_space<vmem>>, %arg7: memref<4x1x128xf32, #tpu.memory_space<vmem>>) attributes {dimension_semantics = [#tpu.dimension_semantics<parallel>, #tpu.dimension_semantics<arbitrary>], iteration_bounds = array<i64: 2, 1>, scalar_prefetch = 0 : i64, scratch_operands = 3 : i64, tpu.core_type = #tpu.core_type<tc>, window_params = [{transform_indices = @transform_0, window_bounds = array<i64: 1, 4, 16, 128>}, {transform_indices = @transform_1, window_bounds = array<i64: 1, 1, 16, 128>}, {transform_indices = @transform_2, window_bounds = array<i64: 1, 4, 1>}]} {
    %c0_i32 = arith.constant 0 : i32
    %0 = arith.cmpi eq, %arg1, %c0_i32 : i32
    %1 = arith.extui %0 : i1 to i32
    %c0_i32_0 = arith.constant 0 : i32
    %2 = arith.cmpi ne, %1, %c0_i32_0 : i32
    scf.if %2 {
      %cst_107 = arith.constant 0.000000e+00 : f32
      %155 = vector.broadcast %cst_107 : f32 to vector<4x1x128xf32>
      %c0_108 = arith.constant 0 : index
      %c0_109 = arith.constant 0 : index
      %c0_110 = arith.constant 0 : index
      %156 = vector.load %arg5[%c0_108, %c0_109, %c0_110] : memref<4x1x128xf32, #tpu.memory_space<vmem>>, vector<4x1x128xf32>
      tpu.vector_store %arg5[%c0_108, %c0_109, %c0_110], %155 {strides = array<i32>} : memref<4x1x128xf32, #tpu.memory_space<vmem>>, vector<4x1x128xf32>,
      %cst_111 = arith.constant 0.000000e+00 : f32
      %157 = vector.broadcast %cst_111 : f32 to vector<4x1x128xf32>
      %c0_112 = arith.constant 0 : index
      %c0_113 = arith.constant 0 : index
      %c0_114 = arith.constant 0 : index
      %158 = vector.load %arg6[%c0_112, %c0_113, %c0_114] : memref<4x1x128xf32, #tpu.memory_space<vmem>>, vector<4x1x128xf32>
      tpu.vector_store %arg6[%c0_112, %c0_113, %c0_114], %157 {strides = array<i32>} : memref<4x1x128xf32, #tpu.memory_space<vmem>>, vector<4x1x128xf32>,
      %cst_115 = arith.constant 0.000000e+00 : f32
      %159 = vector.broadcast %cst_115 : f32 to vector<4x1x128xf32>
      %c0_116 = arith.constant 0 : index
      %c0_117 = arith.constant 0 : index
      %c0_118 = arith.constant 0 : index
      %160 = vector.load %arg7[%c0_116, %c0_117, %c0_118] : memref<4x1x128xf32, #tpu.memory_space<vmem>>, vector<4x1x128xf32>
      tpu.vector_store %arg7[%c0_116, %c0_117, %c0_118], %159 {strides = array<i32>} : memref<4x1x128xf32, #tpu.memory_space<vmem>>, vector<4x1x128xf32>,
    } else {
    }
    %c0 = arith.constant 0 : index
    %c0_1 = arith.constant 0 : index
    %c0_2 = arith.constant 0 : index
    %c0_3 = arith.constant 0 : index
    %3 = vector.load %arg3[%c0, %c0_1, %c0_2, %c0_3] : memref<1x1x16x128xi32, #tpu.memory_space<vmem>>, vector<1x1x16x128xi32>
    %4 = vector.shape_cast %3 : vector<1x1x16x128xi32> to vector<16x128xi32>
    %c0_4 = arith.constant 0 : index
    %c0_5 = arith.constant 0 : index
    %c0_6 = arith.constant 0 : index
    %c0_7 = arith.constant 0 : index
    %5 = vector.load %arg2[%c0_4, %c0_5, %c0_6, %c0_7] : memref<1x4x16x128xf32, #tpu.memory_space<vmem>>, vector<1x1x16x128xf32>
    %6 = vector.shape_cast %5 : vector<1x1x16x128xf32> to vector<16x128xf32>
    %c0_8 = arith.constant 0 : index
    %c1 = arith.constant 1 : index
    %c0_9 = arith.constant 0 : index
    %c0_10 = arith.constant 0 : index
    %7 = vector.load %arg2[%c0_8, %c1, %c0_9, %c0_10] : memref<1x4x16x128xf32, #tpu.memory_space<vmem>>, vector<1x1x16x128xf32>
    %8 = vector.shape_cast %7 : vector<1x1x16x128xf32> to vector<16x128xf32>
    %c0_11 = arith.constant 0 : index
    %c2 = arith.constant 2 : index
    %c0_12 = arith.constant 0 : index
    %c0_13 = arith.constant 0 : index
    %9 = vector.load %arg2[%c0_11, %c2, %c0_12, %c0_13] : memref<1x4x16x128xf32, #tpu.memory_space<vmem>>, vector<1x1x16x128xf32>
    %10 = vector.shape_cast %9 : vector<1x1x16x128xf32> to vector<16x128xf32>
    %c0_14 = arith.constant 0 : index
    %c3 = arith.constant 3 : index
    %c0_15 = arith.constant 0 : index
    %c0_16 = arith.constant 0 : index
    %11 = vector.load %arg2[%c0_14, %c3, %c0_15, %c0_16] : memref<1x4x16x128xf32, #tpu.memory_space<vmem>>, vector<1x1x16x128xf32>
    %12 = vector.shape_cast %11 : vector<1x1x16x128xf32> to vector<16x128xf32>
    %13 = arith.maximumf %6, %8 : vector<16x128xf32>
    %14 = arith.maximumf %13, %10 : vector<16x128xf32>
    %15 = arith.maximumf %14, %12 : vector<16x128xf32>
    %16 = arith.subf %6, %15 : vector<16x128xf32>
    %17 = math.exp %16 : vector<16x128xf32>
    %18 = arith.subf %8, %15 : vector<16x128xf32>
    %19 = math.exp %18 : vector<16x128xf32>
    %20 = arith.subf %10, %15 : vector<16x128xf32>
    %21 = math.exp %20 : vector<16x128xf32>
    %22 = arith.subf %12, %15 : vector<16x128xf32>
    %23 = math.exp %22 : vector<16x128xf32>
    %24 = arith.addf %17, %19 : vector<16x128xf32>
    %25 = arith.addf %24, %21 : vector<16x128xf32>
    %26 = arith.addf %25, %23 : vector<16x128xf32>
    %27 = tpu.reciprocal %26 : vector<16x128xf32> -> vector<16x128xf32>
    %28 = arith.mulf %17, %27 : vector<16x128xf32>
    %29 = arith.mulf %19, %27 : vector<16x128xf32>
    %30 = arith.mulf %21, %27 : vector<16x128xf32>
    %31 = arith.mulf %23, %27 : vector<16x128xf32>
    %c0_i32_17 = arith.constant 0 : i32
    %32 = vector.broadcast %c0_i32_17 : i32 to vector<16x128xi32>
    %33 = arith.cmpi eq, %4, %32 : vector<16x128xi32>
    %cst = arith.constant 0.000000e+00 : f32
    %34 = vector.broadcast %cst : f32 to vector<16x128xf32>
    %35 = arith.select %33, %28, %34 : vector<16x128xi1>, vector<16x128xf32>
    %36 = arith.extui %33 : vector<16x128xi1> to vector<16x128xi32>
    %37 = arith.sitofp %36 : vector<16x128xi32> to vector<16x128xf32>
    %c0_18 = arith.constant 0 : index
    %c0_19 = arith.constant 0 : index
    %c0_20 = arith.constant 0 : index
    %38 = vector.load %arg5[%c0_18, %c0_19, %c0_20] : memref<4x1x128xf32, #tpu.memory_space<vmem>>, vector<1x1x128xf32>
    %39 = vector.shape_cast %38 : vector<1x1x128xf32> to vector<1x128xf32>
    %cst_21 = arith.constant dense<0.000000e+00> : vector<128xf32>
    %40 = vector.multi_reduction <add>, %35, %cst_21 [0] : vector<16x128xf32> to vector<128xf32>
    %41 = vector.shape_cast %40 : vector<128xf32> to vector<1x128xf32>
    %42 = arith.addf %39, %41 : vector<1x128xf32>
    %c0_22 = arith.constant 0 : index
    %c0_23 = arith.constant 0 : index
    %c0_24 = arith.constant 0 : index
    %43 = vector.load %arg5[%c0_22, %c0_23, %c0_24] : memref<4x1x128xf32, #tpu.memory_space<vmem>>, vector<1x1x128xf32>
    %44 = vector.shape_cast %43 : vector<1x1x128xf32> to vector<1x128xf32>
    %45 = vector.shape_cast %42 : vector<1x128xf32> to vector<1x1x128xf32>
    tpu.vector_store %arg5[%c0_22, %c0_23, %c0_24], %45 {strides = array<i32>} : memref<4x1x128xf32, #tpu.memory_space<vmem>>, vector<1x1x128xf32>,
    %c0_25 = arith.constant 0 : index
    %c0_26 = arith.constant 0 : index
    %c0_27 = arith.constant 0 : index
    %46 = vector.load %arg6[%c0_25, %c0_26, %c0_27] : memref<4x1x128xf32, #tpu.memory_space<vmem>>, vector<1x1x128xf32>
    %47 = vector.shape_cast %46 : vector<1x1x128xf32> to vector<1x128xf32>
    %cst_28 = arith.constant dense<0.000000e+00> : vector<128xf32>
    %48 = vector.multi_reduction <add>, %28, %cst_28 [0] : vector<16x128xf32> to vector<128xf32>
    %49 = vector.shape_cast %48 : vector<128xf32> to vector<1x128xf32>
    %50 = arith.addf %47, %49 : vector<1x128xf32>
    %c0_29 = arith.constant 0 : index
    %c0_30 = arith.constant 0 : index
    %c0_31 = arith.constant 0 : index
    %51 = vector.load %arg6[%c0_29, %c0_30, %c0_31] : memref<4x1x128xf32, #tpu.memory_space<vmem>>, vector<1x1x128xf32>
    %52 = vector.shape_cast %51 : vector<1x1x128xf32> to vector<1x128xf32>
    %53 = vector.shape_cast %50 : vector<1x128xf32> to vector<1x1x128xf32>
    tpu.vector_store %arg6[%c0_29, %c0_30, %c0_31], %53 {strides = array<i32>} : memref<4x1x128xf32, #tpu.memory_space<vmem>>, vector<1x1x128xf32>,
    %c0_32 = arith.constant 0 : index
    %c0_33 = arith.constant 0 : index
    %c0_34 = arith.constant 0 : index
    %54 = vector.load %arg7[%c0_32, %c0_33, %c0_34] : memref<4x1x128xf32, #tpu.memory_space<vmem>>, vector<1x1x128xf32>
    %55 = vector.shape_cast %54 : vector<1x1x128xf32> to vector<1x128xf32>
    %cst_35 = arith.constant dense<0.000000e+00> : vector<128xf32>
    %56 = vector.multi_reduction <add>, %37, %cst_35 [0] : vector<16x128xf32> to vector<128xf32>
    %57 = vector.shape_cast %56 : vector<128xf32> to vector<1x128xf32>
    %58 = arith.addf %55, %57 : vector<1x128xf32>
    %c0_36 = arith.constant 0 : index
    %c0_37 = arith.constant 0 : index
    %c0_38 = arith.constant 0 : index
    %59 = vector.load %arg7[%c0_36, %c0_37, %c0_38] : memref<4x1x128xf32, #tpu.memory_space<vmem>>, vector<1x1x128xf32>
    %60 = vector.shape_cast %59 : vector<1x1x128xf32> to vector<1x128xf32>
    %61 = vector.shape_cast %58 : vector<1x128xf32> to vector<1x1x128xf32>
    tpu.vector_store %arg7[%c0_36, %c0_37, %c0_38], %61 {strides = array<i32>} : memref<4x1x128xf32, #tpu.memory_space<vmem>>, vector<1x1x128xf32>,
    %c1_i32 = arith.constant 1 : i32
    %62 = vector.broadcast %c1_i32 : i32 to vector<16x128xi32>
    %63 = arith.cmpi eq, %4, %62 : vector<16x128xi32>
    %cst_39 = arith.constant 0.000000e+00 : f32
    %64 = vector.broadcast %cst_39 : f32 to vector<16x128xf32>
    %65 = arith.select %63, %29, %64 : vector<16x128xi1>, vector<16x128xf32>
    %66 = arith.extui %63 : vector<16x128xi1> to vector<16x128xi32>
    %67 = arith.sitofp %66 : vector<16x128xi32> to vector<16x128xf32>
    %c1_40 = arith.constant 1 : index
    %c0_41 = arith.constant 0 : index
    %c0_42 = arith.constant 0 : index
    %68 = vector.load %arg5[%c1_40, %c0_41, %c0_42] : memref<4x1x128xf32, #tpu.memory_space<vmem>>, vector<1x1x128xf32>
    %69 = vector.shape_cast %68 : vector<1x1x128xf32> to vector<1x128xf32>
    %cst_43 = arith.constant dense<0.000000e+00> : vector<128xf32>
    %70 = vector.multi_reduction <add>, %65, %cst_43 [0] : vector<16x128xf32> to vector<128xf32>
    %71 = vector.shape_cast %70 : vector<128xf32> to vector<1x128xf32>
    %72 = arith.addf %69, %71 : vector<1x128xf32>
    %c1_44 = arith.constant 1 : index
    %c0_45 = arith.constant 0 : index
    %c0_46 = arith.constant 0 : index
    %73 = vector.load %arg5[%c1_44, %c0_45, %c0_46] : memref<4x1x128xf32, #tpu.memory_space<vmem>>, vector<1x1x128xf32>
    %74 = vector.shape_cast %73 : vector<1x1x128xf32> to vector<1x128xf32>
    %75 = vector.shape_cast %72 : vector<1x128xf32> to vector<1x1x128xf32>
    tpu.vector_store %arg5[%c1_44, %c0_45, %c0_46], %75 {strides = array<i32>} : memref<4x1x128xf32, #tpu.memory_space<vmem>>, vector<1x1x128xf32>,
    %c1_47 = arith.constant 1 : index
    %c0_48 = arith.constant 0 : index
    %c0_49 = arith.constant 0 : index
    %76 = vector.load %arg6[%c1_47, %c0_48, %c0_49] : memref<4x1x128xf32, #tpu.memory_space<vmem>>, vector<1x1x128xf32>
    %77 = vector.shape_cast %76 : vector<1x1x128xf32> to vector<1x128xf32>
    %cst_50 = arith.constant dense<0.000000e+00> : vector<128xf32>
    %78 = vector.multi_reduction <add>, %29, %cst_50 [0] : vector<16x128xf32> to vector<128xf32>
    %79 = vector.shape_cast %78 : vector<128xf32> to vector<1x128xf32>
    %80 = arith.addf %77, %79 : vector<1x128xf32>
    %c1_51 = arith.constant 1 : index
    %c0_52 = arith.constant 0 : index
    %c0_53 = arith.constant 0 : index
    %81 = vector.load %arg6[%c1_51, %c0_52, %c0_53] : memref<4x1x128xf32, #tpu.memory_space<vmem>>, vector<1x1x128xf32>
    %82 = vector.shape_cast %81 : vector<1x1x128xf32> to vector<1x128xf32>
    %83 = vector.shape_cast %80 : vector<1x128xf32> to vector<1x1x128xf32>
    tpu.vector_store %arg6[%c1_51, %c0_52, %c0_53], %83 {strides = array<i32>} : memref<4x1x128xf32, #tpu.memory_space<vmem>>, vector<1x1x128xf32>,
    %c1_54 = arith.constant 1 : index
    %c0_55 = arith.constant 0 : index
    %c0_56 = arith.constant 0 : index
    %84 = vector.load %arg7[%c1_54, %c0_55, %c0_56] : memref<4x1x128xf32, #tpu.memory_space<vmem>>, vector<1x1x128xf32>
    %85 = vector.shape_cast %84 : vector<1x1x128xf32> to vector<1x128xf32>
    %cst_57 = arith.constant dense<0.000000e+00> : vector<128xf32>
    %86 = vector.multi_reduction <add>, %67, %cst_57 [0] : vector<16x128xf32> to vector<128xf32>
    %87 = vector.shape_cast %86 : vector<128xf32> to vector<1x128xf32>
    %88 = arith.addf %85, %87 : vector<1x128xf32>
    %c1_58 = arith.constant 1 : index
    %c0_59 = arith.constant 0 : index
    %c0_60 = arith.constant 0 : index
    %89 = vector.load %arg7[%c1_58, %c0_59, %c0_60] : memref<4x1x128xf32, #tpu.memory_space<vmem>>, vector<1x1x128xf32>
    %90 = vector.shape_cast %89 : vector<1x1x128xf32> to vector<1x128xf32>
    %91 = vector.shape_cast %88 : vector<1x128xf32> to vector<1x1x128xf32>
    tpu.vector_store %arg7[%c1_58, %c0_59, %c0_60], %91 {strides = array<i32>} : memref<4x1x128xf32, #tpu.memory_space<vmem>>, vector<1x1x128xf32>,
    %c2_i32 = arith.constant 2 : i32
    %92 = vector.broadcast %c2_i32 : i32 to vector<16x128xi32>
    %93 = arith.cmpi eq, %4, %92 : vector<16x128xi32>
    %cst_61 = arith.constant 0.000000e+00 : f32
    %94 = vector.broadcast %cst_61 : f32 to vector<16x128xf32>
    %95 = arith.select %93, %30, %94 : vector<16x128xi1>, vector<16x128xf32>
    %96 = arith.extui %93 : vector<16x128xi1> to vector<16x128xi32>
    %97 = arith.sitofp %96 : vector<16x128xi32> to vector<16x128xf32>
    %c2_62 = arith.constant 2 : index
    %c0_63 = arith.constant 0 : index
    %c0_64 = arith.constant 0 : index
    %98 = vector.load %arg5[%c2_62, %c0_63, %c0_64] : memref<4x1x128xf32, #tpu.memory_space<vmem>>, vector<1x1x128xf32>
    %99 = vector.shape_cast %98 : vector<1x1x128xf32> to vector<1x128xf32>
    %cst_65 = arith.constant dense<0.000000e+00> : vector<128xf32>
    %100 = vector.multi_reduction <add>, %95, %cst_65 [0] : vector<16x128xf32> to vector<128xf32>
    %101 = vector.shape_cast %100 : vector<128xf32> to vector<1x128xf32>
    %102 = arith.addf %99, %101 : vector<1x128xf32>
    %c2_66 = arith.constant 2 : index
    %c0_67 = arith.constant 0 : index
    %c0_68 = arith.constant 0 : index
    %103 = vector.load %arg5[%c2_66, %c0_67, %c0_68] : memref<4x1x128xf32, #tpu.memory_space<vmem>>, vector<1x1x128xf32>
    %104 = vector.shape_cast %103 : vector<1x1x128xf32> to vector<1x128xf32>
    %105 = vector.shape_cast %102 : vector<1x128xf32> to vector<1x1x128xf32>
    tpu.vector_store %arg5[%c2_66, %c0_67, %c0_68], %105 {strides = array<i32>} : memref<4x1x128xf32, #tpu.memory_space<vmem>>, vector<1x1x128xf32>,
    %c2_69 = arith.constant 2 : index
    %c0_70 = arith.constant 0 : index
    %c0_71 = arith.constant 0 : index
    %106 = vector.load %arg6[%c2_69, %c0_70, %c0_71] : memref<4x1x128xf32, #tpu.memory_space<vmem>>, vector<1x1x128xf32>
    %107 = vector.shape_cast %106 : vector<1x1x128xf32> to vector<1x128xf32>
    %cst_72 = arith.constant dense<0.000000e+00> : vector<128xf32>
    %108 = vector.multi_reduction <add>, %30, %cst_72 [0] : vector<16x128xf32> to vector<128xf32>
    %109 = vector.shape_cast %108 : vector<128xf32> to vector<1x128xf32>
    %110 = arith.addf %107, %109 : vector<1x128xf32>
    %c2_73 = arith.constant 2 : index
    %c0_74 = arith.constant 0 : index
    %c0_75 = arith.constant 0 : index
    %111 = vector.load %arg6[%c2_73, %c0_74, %c0_75] : memref<4x1x128xf32, #tpu.memory_space<vmem>>, vector<1x1x128xf32>
    %112 = vector.shape_cast %111 : vector<1x1x128xf32> to vector<1x128xf32>
    %113 = vector.shape_cast %110 : vector<1x128xf32> to vector<1x1x128xf32>
    tpu.vector_store %arg6[%c2_73, %c0_74, %c0_75], %113 {strides = array<i32>} : memref<4x1x128xf32, #tpu.memory_space<vmem>>, vector<1x1x128xf32>,
    %c2_76 = arith.constant 2 : index
    %c0_77 = arith.constant 0 : index
    %c0_78 = arith.constant 0 : index
    %114 = vector.load %arg7[%c2_76, %c0_77, %c0_78] : memref<4x1x128xf32, #tpu.memory_space<vmem>>, vector<1x1x128xf32>
    %115 = vector.shape_cast %114 : vector<1x1x128xf32> to vector<1x128xf32>
    %cst_79 = arith.constant dense<0.000000e+00> : vector<128xf32>
    %116 = vector.multi_reduction <add>, %97, %cst_79 [0] : vector<16x128xf32> to vector<128xf32>
    %117 = vector.shape_cast %116 : vector<128xf32> to vector<1x128xf32>
    %118 = arith.addf %115, %117 : vector<1x128xf32>
    %c2_80 = arith.constant 2 : index
    %c0_81 = arith.constant 0 : index
    %c0_82 = arith.constant 0 : index
    %119 = vector.load %arg7[%c2_80, %c0_81, %c0_82] : memref<4x1x128xf32, #tpu.memory_space<vmem>>, vector<1x1x128xf32>
    %120 = vector.shape_cast %119 : vector<1x1x128xf32> to vector<1x128xf32>
    %121 = vector.shape_cast %118 : vector<1x128xf32> to vector<1x1x128xf32>
    tpu.vector_store %arg7[%c2_80, %c0_81, %c0_82], %121 {strides = array<i32>} : memref<4x1x128xf32, #tpu.memory_space<vmem>>, vector<1x1x128xf32>,
    %c3_i32 = arith.constant 3 : i32
    %122 = vector.broadcast %c3_i32 : i32 to vector<16x128xi32>
    %123 = arith.cmpi eq, %4, %122 : vector<16x128xi32>
    %cst_83 = arith.constant 0.000000e+00 : f32
    %124 = vector.broadcast %cst_83 : f32 to vector<16x128xf32>
    %125 = arith.select %123, %31, %124 : vector<16x128xi1>, vector<16x128xf32>
    %126 = arith.extui %123 : vector<16x128xi1> to vector<16x128xi32>
    %127 = arith.sitofp %126 : vector<16x128xi32> to vector<16x128xf32>
    %c3_84 = arith.constant 3 : index
    %c0_85 = arith.constant 0 : index
    %c0_86 = arith.constant 0 : index
    %128 = vector.load %arg5[%c3_84, %c0_85, %c0_86] : memref<4x1x128xf32, #tpu.memory_space<vmem>>, vector<1x1x128xf32>
    %129 = vector.shape_cast %128 : vector<1x1x128xf32> to vector<1x128xf32>
    %cst_87 = arith.constant dense<0.000000e+00> : vector<128xf32>
    %130 = vector.multi_reduction <add>, %125, %cst_87 [0] : vector<16x128xf32> to vector<128xf32>
    %131 = vector.shape_cast %130 : vector<128xf32> to vector<1x128xf32>
    %132 = arith.addf %129, %131 : vector<1x128xf32>
    %c3_88 = arith.constant 3 : index
    %c0_89 = arith.constant 0 : index
    %c0_90 = arith.constant 0 : index
    %133 = vector.load %arg5[%c3_88, %c0_89, %c0_90] : memref<4x1x128xf32, #tpu.memory_space<vmem>>, vector<1x1x128xf32>
    %134 = vector.shape_cast %133 : vector<1x1x128xf32> to vector<1x128xf32>
    %135 = vector.shape_cast %132 : vector<1x128xf32> to vector<1x1x128xf32>
    tpu.vector_store %arg5[%c3_88, %c0_89, %c0_90], %135 {strides = array<i32>} : memref<4x1x128xf32, #tpu.memory_space<vmem>>, vector<1x1x128xf32>,
    %c3_91 = arith.constant 3 : index
    %c0_92 = arith.constant 0 : index
    %c0_93 = arith.constant 0 : index
    %136 = vector.load %arg6[%c3_91, %c0_92, %c0_93] : memref<4x1x128xf32, #tpu.memory_space<vmem>>, vector<1x1x128xf32>
    %137 = vector.shape_cast %136 : vector<1x1x128xf32> to vector<1x128xf32>
    %cst_94 = arith.constant dense<0.000000e+00> : vector<128xf32>
    %138 = vector.multi_reduction <add>, %31, %cst_94 [0] : vector<16x128xf32> to vector<128xf32>
    %139 = vector.shape_cast %138 : vector<128xf32> to vector<1x128xf32>
    %140 = arith.addf %137, %139 : vector<1x128xf32>
    %c3_95 = arith.constant 3 : index
    %c0_96 = arith.constant 0 : index
    %c0_97 = arith.constant 0 : index
    %141 = vector.load %arg6[%c3_95, %c0_96, %c0_97] : memref<4x1x128xf32, #tpu.memory_space<vmem>>, vector<1x1x128xf32>
    %142 = vector.shape_cast %141 : vector<1x1x128xf32> to vector<1x128xf32>
    %143 = vector.shape_cast %140 : vector<1x128xf32> to vector<1x1x128xf32>
    tpu.vector_store %arg6[%c3_95, %c0_96, %c0_97], %143 {strides = array<i32>} : memref<4x1x128xf32, #tpu.memory_space<vmem>>, vector<1x1x128xf32>,
    %c3_98 = arith.constant 3 : index
    %c0_99 = arith.constant 0 : index
    %c0_100 = arith.constant 0 : index
    %144 = vector.load %arg7[%c3_98, %c0_99, %c0_100] : memref<4x1x128xf32, #tpu.memory_space<vmem>>, vector<1x1x128xf32>
    %145 = vector.shape_cast %144 : vector<1x1x128xf32> to vector<1x128xf32>
    %cst_101 = arith.constant dense<0.000000e+00> : vector<128xf32>
    %146 = vector.multi_reduction <add>, %127, %cst_101 [0] : vector<16x128xf32> to vector<128xf32>
    %147 = vector.shape_cast %146 : vector<128xf32> to vector<1x128xf32>
    %148 = arith.addf %145, %147 : vector<1x128xf32>
    %c3_102 = arith.constant 3 : index
    %c0_103 = arith.constant 0 : index
    %c0_104 = arith.constant 0 : index
    %149 = vector.load %arg7[%c3_102, %c0_103, %c0_104] : memref<4x1x128xf32, #tpu.memory_space<vmem>>, vector<1x1x128xf32>
    %150 = vector.shape_cast %149 : vector<1x1x128xf32> to vector<1x128xf32>
    %151 = vector.shape_cast %148 : vector<1x128xf32> to vector<1x1x128xf32>
    tpu.vector_store %arg7[%c3_102, %c0_103, %c0_104], %151 {strides = array<i32>} : memref<4x1x128xf32, #tpu.memory_space<vmem>>, vector<1x1x128xf32>,
    %c0_i32_105 = arith.constant 0 : i32
    %152 = arith.cmpi eq, %arg1, %c0_i32_105 : i32
    %153 = arith.extui %152 : i1 to i32
    %c0_i32_106 = arith.constant 0 : i32
    %154 = arith.cmpi ne, %153, %c0_i32_106 : i32
    scf.if %154 {
      %c0_107 = arith.constant 0 : index
      %c0_108 = arith.constant 0 : index
      %c0_109 = arith.constant 0 : index
      %155 = vector.load %arg5[%c0_107, %c0_108, %c0_109] : memref<4x1x128xf32, #tpu.memory_space<vmem>>, vector<4x1x128xf32>
      %cst_110 = arith.constant dense<0.000000e+00> : vector<4x1xf32>
      %156 = vector.multi_reduction <add>, %155, %cst_110 [2] : vector<4x1x128xf32> to vector<4x1xf32>
      %c0_111 = arith.constant 0 : index
      %c0_112 = arith.constant 0 : index
      %c0_113 = arith.constant 0 : index
      %157 = vector.load %arg6[%c0_111, %c0_112, %c0_113] : memref<4x1x128xf32, #tpu.memory_space<vmem>>, vector<4x1x128xf32>
      %cst_114 = arith.constant dense<0.000000e+00> : vector<4x1xf32>
      %158 = vector.multi_reduction <add>, %157, %cst_114 [2] : vector<4x1x128xf32> to vector<4x1xf32>
      %c0_115 = arith.constant 0 : index
      %c0_116 = arith.constant 0 : index
      %c0_117 = arith.constant 0 : index
      %159 = vector.load %arg7[%c0_115, %c0_116, %c0_117] : memref<4x1x128xf32, #tpu.memory_space<vmem>>, vector<4x1x128xf32>
      %cst_118 = arith.constant dense<0.000000e+00> : vector<4x1xf32>
      %160 = vector.multi_reduction <add>, %159, %cst_118 [2] : vector<4x1x128xf32> to vector<4x1xf32>
      %cst_119 = arith.constant 4.480000e+02 : f32
      %161 = vector.broadcast %cst_119 : f32 to vector<4x1xf32>
      %162 = arith.subf %158, %161 : vector<4x1xf32>
      %cst_120 = arith.constant 2.000000e+00 : f32
      %163 = vector.broadcast %cst_120 : f32 to vector<4x1xf32>
      %164 = arith.mulf %163, %156 : vector<4x1xf32>
      %cst_121 = arith.constant 9.99999997E-7 : f32
      %165 = vector.broadcast %cst_121 : f32 to vector<4x1xf32>
      %166 = arith.addf %164, %165 : vector<4x1xf32>
      %167 = arith.addf %162, %160 : vector<4x1xf32>
      %cst_122 = arith.constant 9.99999997E-7 : f32
      %168 = vector.broadcast %cst_122 : f32 to vector<4x1xf32>
      %169 = arith.addf %167, %168 : vector<4x1xf32>
      %170 = arith.divf %166, %169 : vector<4x1xf32>
      %171 = vector.shape_cast %170 : vector<4x1xf32> to vector<1x4x1xf32>
      %c0_123 = arith.constant 0 : index
      %c0_124 = arith.constant 0 : index
      %c0_125 = arith.constant 0 : index
      %172 = vector.load %arg4[%c0_123, %c0_124, %c0_125] : memref<1x4x1xf32, #tpu.memory_space<vmem>>, vector<1x4x1xf32>
      tpu.vector_store %arg4[%c0_123, %c0_124, %c0_125], %171 {strides = array<i32>} : memref<1x4x1xf32, #tpu.memory_space<vmem>>, vector<1x4x1xf32>,
    } else {
    }
    return
  }
  func.func @transform_0(%arg0: i32, %arg1: i32) -> (i32, i32, i32, i32) {
    %c0_i32 = arith.constant 0 : i32
    %c0_i32_0 = arith.constant 0 : i32
    %c0_i32_1 = arith.constant 0 : i32
    return %arg0, %c0_i32, %arg1, %c0_i32_0 : i32, i32, i32, i32
  }
  func.func @transform_1(%arg0: i32, %arg1: i32) -> (i32, i32, i32, i32) {
    %c0_i32 = arith.constant 0 : i32
    %c0_i32_0 = arith.constant 0 : i32
    %c0_i32_1 = arith.constant 0 : i32
    return %arg0, %c0_i32, %arg1, %c0_i32_0 : i32, i32, i32, i32
  }
  func.func @transform_2(%arg0: i32, %arg1: i32) -> (i32, i32, i32) {
    %c0_i32 = arith.constant 0 : i32
    %c0_i32_0 = arith.constant 0 : i32
    %c0_i32_1 = arith.constant 0 : i32
    return %arg0, %c0_i32, %c0_i32_0 : i32, i32, i32
  }
}

</mosaic_0001>

<llo_original>
// kernel: tpu_custom_call.1
$region0: #{tpu_custom_call.1}
  #allocation0 [shape = 'u32[]', space=smem, size = 0x4, offset = 0x4, fixed_abs, tag = 'smem constant byte address 0x4 - core index']
  #allocation1 [shape = 'u32[144,128]{1,0:T(1,128)}', space=vmem, size = 0x12000, scoped, tag = 'internal scratch']
  #allocation2 [shape = 'f32[4,1,128]{2,1,0:T(1,128)}', space=vmem, size = 0x800, scoped, tag = 'scratch operand']
  #allocation3 [shape = 'f32[4,1,128]{2,1,0:T(1,128)}', space=vmem, size = 0x800, scoped, tag = 'scratch operand']
  #allocation4 [shape = 'f32[4,1,128]{2,1,0:T(1,128)}', space=vmem, size = 0x800, scoped, tag = 'scratch operand']
  %s0 = inlined_call_operand.hbm [shape: f32[2,4,16,128], index: 0, kind: input, shape index: {}]
  %s1 = inlined_call_operand.hbm [shape: s32[2,1,16,128], index: 1, kind: input, shape index: {}]
  %s2 = inlined_call_operand.vmem [shape: f32[2,4,1], index: 2, kind: output, shape index: {}]
  %s3 = sld [smem:[#allocation0]]
  $region57: #{tpu_custom_call.1} parent=0
    _
  %s5 = ssub.s32 1, %s3
  %s6 = scalar_select 0, %s5, %s3
  $region1: #{tpu_custom_call.1} parent=0
    #allocation5 [shape = 'u8[65536]{0}', space=vmem, size = 0x10000, scoped, tag = 'input window, operand 0']
    #allocation6 [shape = 's32[2]{0}', space=sflag, size = 0x8, scoped, tag = 'scoped memory for tpu_custom_call.1']
    #allocation7 [shape = 'u8[16384]{0}', space=vmem, size = 0x4000, scoped, tag = 'input window, operand 1']
    #allocation8 [shape = 's32[2]{0}', space=sflag, size = 0x8, scoped, tag = 'scoped memory for tpu_custom_call.1']
    %7 = vsyncpa [#allocation6], 0
    %s8 = scalar_lea.sflag [#allocation6], 1
    %9 = vsyncpa %s8, 0
    %10 = vsyncpa [#allocation8], 0
    %s11 = scalar_lea.sflag [#allocation8], 1
    %12 = vsyncpa %s11, 0
    loop: start=0, step=1, limit=4
    $region2: #{tpu_custom_call.1} parent=1 // loop_pre_header
      _
    $region3: #{tpu_custom_call.1} parent=1 // loop_header
      %s14 = sphi 0, %s18
      %p15 = scmp.ge.s32.totalorder %s14, 4
      %s21 = sphi 0, %s33
      %s22 = sphi 0, %s29
      %s23 = sphi 0, %s21
      %s24 = sphi 0, %s22
      %s25 = sphi 0, %s23
      %s26 = sphi 0, %s24
      %s38 = sphi 0, %s40
      %s41 = sphi 0, %s38
      %s42 = sphi 0, %s41
      %s58 = sphi 0, %s42
      %s66 = sphi 0, %s68
      %s69 = sphi 0, %s66
      %s70 = sphi 0, %s69
      %s86 = sphi 0, %s70
      %s92 = sphi 0, %s94
      %s95 = sphi 0, %s92
      %s96 = sphi 0, %s95
      %s112 = sphi 0, %s96
    $region4: #{tpu_custom_call.1} parent=1 // loop_header_branch
      %17 = sbr.rel (%p15) target = $region8
    $region5: #{tpu_custom_call.1} parent=1 // loop_body
      %s19 = ssub.s32 %s14, 1
      %s20 = ssub.s32 %s14, 2
      %s27 = sadd.s32 1, %s22
      %p28 = scmp.ge.s32.totalorder %s27, 1
      %s29 = scalar_select %p28, 0, %s27
      %s30 = sadd.s32 1, %s21
      %s31 = scalar_select %p28, %s30, %s21
      %p32 = scmp.ge.s32.totalorder %s31, 2
      %s33 = scalar_select %p32, 0, %s31
      %s34 = ssub.s32 %s21, %s33
      %s35 = ssub.s32 %s22, %s29
      %s36 = sor.u32 %s34, %s35
      %p37 = scmp.eq.s32.totalorder %s36, 0
      %s39 = sadd.s32 %s38, 1
      %s40 = scalar_select %p37, %s38, %s39
      %p43 = pneg %p37
      %p44 = scmp.eq.s32.totalorder %s14, 1
      %p45 = por %p43, %p44
      %p46 = scmp.ne.s32.totalorder %s38, %s41
      %p47 = scmp.eq.s32.totalorder %s14, 0
      %p48 = por %p46, %p47
      %p49 = scmp.ne.s32.totalorder %s38, %s41
      %p50 = scmp.eq.s32.totalorder %s19, 1
      %p51 = por %p49, %p50
      %p52 = scmp.ne.s32.totalorder %s41, %s42
      %p53 = scmp.eq.s32.totalorder %s19, 0
      %p54 = por %p52, %p53
      %p55 = scmp.ne.s32.totalorder %s41, %s42
      %p56 = scmp.eq.s32.totalorder %s20, 1
      %p57 = por %p55, %p56
      %p59 = scmp.ne.s32.totalorder %s42, %s58
      %p60 = scmp.eq.s32.totalorder %s20, 0
      %p61 = por %p59, %p60
      %s62 = ssub.s32 %s21, %s33
      %s63 = ssub.s32 %s22, %s29
      %s64 = sor.u32 %s62, %s63
      %p65 = scmp.eq.s32.totalorder %s64, 0
      %s67 = sadd.s32 %s66, 1
      %s68 = scalar_select %p65, %s66, %s67
      %p71 = pneg %p65
      %p72 = scmp.eq.s32.totalorder %s14, 1
      %p73 = por %p71, %p72
      %p74 = scmp.ne.s32.totalorder %s66, %s69
      %p75 = scmp.eq.s32.totalorder %s14, 0
      %p76 = por %p74, %p75
      %p77 = scmp.ne.s32.totalorder %s66, %s69
      %p78 = scmp.eq.s32.totalorder %s19, 1
      %p79 = por %p77, %p78
      %p80 = scmp.ne.s32.totalorder %s69, %s70
      %p81 = scmp.eq.s32.totalorder %s19, 0
      %p82 = por %p80, %p81
      %p83 = scmp.ne.s32.totalorder %s69, %s70
      %p84 = scmp.eq.s32.totalorder %s20, 1
      %p85 = por %p83, %p84
      %p87 = scmp.ne.s32.totalorder %s70, %s86
      %p88 = scmp.eq.s32.totalorder %s20, 0
      %p89 = por %p87, %p88
      %s90 = ssub.s32 %s21, %s33
      %p91 = scmp.eq.s32.totalorder %s90, 0
      %s93 = sadd.s32 %s92, 1
      %s94 = scalar_select %p91, %s92, %s93
      %p97 = pneg %p91
      %p98 = scmp.eq.s32.totalorder %s14, 1
      %p99 = por %p97, %p98
      %p100 = scmp.ne.s32.totalorder %s92, %s95
      %p101 = scmp.eq.s32.totalorder %s14, 0
      %p102 = por %p100, %p101
      %p103 = scmp.ne.s32.totalorder %s92, %s95
      %p104 = scmp.eq.s32.totalorder %s19, 1
      %p105 = por %p103, %p104
      %p106 = scmp.ne.s32.totalorder %s95, %s96
      %p107 = scmp.eq.s32.totalorder %s19, 0
      %p108 = por %p106, %p107
      %p109 = scmp.ne.s32.totalorder %s95, %s96
      %p110 = scmp.eq.s32.totalorder %s20, 1
      %p111 = por %p109, %p110
      %p113 = scmp.ne.s32.totalorder %s96, %s112
      %p114 = scmp.eq.s32.totalorder %s20, 0
      %p115 = por %p113, %p114
      %p116 = scmp.le.s32.totalorder 1, %s14
      %p117 = scmp.lt.s32.totalorder %s14, 3
      %p118 = pnand %p116, %p117
      %p119 = pneg %p118
      // Predicated region
      $region9: #{tpu_custom_call.1} parent=5 // pred_check
        _
      $region10: #{tpu_custom_call.1} parent=5 // pred_check_branch
        %121 = sbr.rel (%p118) target = $region12
      $region11: #{tpu_custom_call.1} parent=5 // pred_region
        %s122 = ssub.s32 %s14, 1
      $region12: #{tpu_custom_call.1} parent=5 // pred_fallthru
        _
      %p123 = scmp.lt.s32.totalorder %s14, 2
      // Predicated region
      $region13: #{tpu_custom_call.1} parent=5 // pred_check
        %p124 = pneg %p123
      $region14: #{tpu_custom_call.1} parent=5 // pred_check_branch
        %126 = sbr.rel (%p124) target = $region16
      $region15: #{tpu_custom_call.1} parent=5 // pred_region
        // Predicated region
        $region17: #{tpu_custom_call.1} parent=15 // pred_check
          %p127 = pneg %p48
        $region18: #{tpu_custom_call.1} parent=15 // pred_check_branch
          %129 = sbr.rel (%p127) target = $region20
        $region19: #{tpu_custom_call.1} parent=15 // pred_region
          %s130 = sand.u32 %s38, 1
          %s131 = scalar_lea.sflag [#allocation6], %s130
          %s132 = sand.u32 %s38, 1
          %s133 = smul.addr %s132, 64
          %s134 = scalar_lea.vmem [#allocation5], %s133
          %s135 = smul.u32 2, %s22
          %s137 = ssub.s32 1024, 1024
          %138 = vsyncadd %s131, %s137
          %s139 = smul.addr %s21, 8
          %s140 = sadd.s32 %s135, %s139
          %s141 = smul.addr %s140, 128
          %s142 = scalar_lea.hbm %s0, %s141
          %s143 = sshll.u32 %s134, 4
          %s144 = int_to_ptr.vmem [resolvable:$true] %s143
          %149 = dma.hbm_to_vmem [thread:$0]  %s142, 1024, %s144, %s131, 128, 128, 8
        $region20: #{tpu_custom_call.1} parent=15 // pred_fallthru
          _
        // Predicated region
        $region21: #{tpu_custom_call.1} parent=15 // pred_check
          %p150 = pneg %p76
        $region22: #{tpu_custom_call.1} parent=15 // pred_check_branch
          %152 = sbr.rel (%p150) target = $region24
        $region23: #{tpu_custom_call.1} parent=15 // pred_region
          %s153 = sand.u32 %s66, 1
          %s154 = scalar_lea.sflag [#allocation8], %s153
          %s155 = sand.u32 %s66, 1
          %s156 = smul.addr %s155, 16
          %s157 = scalar_lea.vmem [#allocation7], %s156
          %s158 = smul.u32 2, %s22
          %s160 = ssub.s32 256, 256
          %161 = vsyncadd %s154, %s160
          %s162 = smul.addr %s21, 2
          %s163 = sadd.s32 %s158, %s162
          %s164 = smul.addr %s163, 128
          %s165 = scalar_lea.hbm %s1, %s164
          %s166 = sshll.u32 %s157, 4
          %s167 = int_to_ptr.vmem [resolvable:$true] %s166
          %172 = dma.hbm_to_vmem [thread:$0]  %s165, 256, %s167, %s154, 128, 128, 8
        $region24: #{tpu_custom_call.1} parent=15 // pred_fallthru
          _
      $region16: #{tpu_custom_call.1} parent=5 // pred_fallthru
        _
      %p173 = scmp.le.s32.totalorder 1, %s14
      %p174 = scmp.lt.s32.totalorder %s14, 3
      %p175 = pnand %p173, %p174
      %p176 = pneg %p175
      // Predicated region
      $region25: #{tpu_custom_call.1} parent=5 // pred_check
        _
      $region26: #{tpu_custom_call.1} parent=5 // pred_check_branch
        %178 = sbr.rel (%p175) target = $region28
      $region27: #{tpu_custom_call.1} parent=5 // pred_region
        %s179 = ssub.s32 %s14, 1
        %s180 = sand.u32 %s41, 1
        %s181 = scalar_lea.sflag [#allocation6], %s180
        %s182 = sand.u32 %s41, 1
        %s183 = smul.addr %s182, 64
        %s184 = scalar_lea.vmem [#allocation5], %s183
        // Predicated region
        $region29: #{tpu_custom_call.1} parent=27 // pred_check
          %p185 = pneg %p54
        $region30: #{tpu_custom_call.1} parent=27 // pred_check_branch
          %187 = sbr.rel (%p185) target = $region32
        $region31: #{tpu_custom_call.1} parent=27 // pred_region
          %188 = dma.done %s181, 1024
        $region32: #{tpu_custom_call.1} parent=27 // pred_fallthru
          _
        %s189 = sand.u32 %s69, 1
        %s190 = scalar_lea.sflag [#allocation8], %s189
        %s191 = sand.u32 %s69, 1
        %s192 = smul.addr %s191, 16
        %s193 = scalar_lea.vmem [#allocation7], %s192
        // Predicated region
        $region33: #{tpu_custom_call.1} parent=27 // pred_check
          %p194 = pneg %p82
        $region34: #{tpu_custom_call.1} parent=27 // pred_check_branch
          %196 = sbr.rel (%p194) target = $region36
        $region35: #{tpu_custom_call.1} parent=27 // pred_region
          %197 = dma.done %s190, 256
        $region36: #{tpu_custom_call.1} parent=27 // pred_fallthru
          _
        %s198 = sand.u32 %s41, 1
        %s199 = scalar_lea.sflag [#allocation6], %s198
        %s200 = sand.u32 %s41, 1
        %s201 = smul.addr %s200, 64
        %s202 = scalar_lea.vmem [#allocation5], %s201
        %p203 = pneg %p54
        %p204 = pneg %p51
        %s205 = sand.u32 %s69, 1
        %s206 = scalar_lea.sflag [#allocation8], %s205
        %s207 = sand.u32 %s69, 1
        %s208 = smul.addr %s207, 16
        %s209 = scalar_lea.vmem [#allocation7], %s208
        %p210 = pneg %p82
        %p211 = pneg %p79
        %p212 = pneg %p108
        %p213 = pneg %p105
        %p214 = scmp.lt.s32.totalorder %s23, 1
        %s215 = scalar_select %p214, %s23, 1
        %s216 = smul.addr %s215, 4
        %s217 = scalar_lea.vmem %s2, %s216
        %s218 = smul.u32 2, %s24
        %s219 = smul.u32 2, %s24
        %p220 = scmp.lt.s32.totalorder %s23, 1
        %s221 = scalar_select %p220, %s23, 1
        %s222 = smul.addr %s221, 4
        %s223 = scalar_lea.vmem %s2, %s222
        %p224 = scmp.eq.s32.totalorder %s24, 0
        // Predicated region
        $region37: #{tpu_custom_call.1} parent=27 // pred_check
          %p225 = pneg %p224
        $region38: #{tpu_custom_call.1} parent=27 // pred_check_branch
          %227 = sbr.rel (%p225) target = $region40
        $region39: #{tpu_custom_call.1} parent=27 // pred_region
          %228 = vst [vmem:[#allocation2] sm:$0x1] 0.0
          %229 = vst [vmem:[#allocation2 + $0x1] sm:$0x1] 0.0
          %230 = vst [vmem:[#allocation2 + $0x2] sm:$0x1] 0.0
          %231 = vst [vmem:[#allocation2 + $0x3] sm:$0x1] 0.0
          %232 = vst [vmem:[#allocation3] sm:$0x1] 0.0
          %233 = vst [vmem:[#allocation3 + $0x1] sm:$0x1] 0.0
          %234 = vst [vmem:[#allocation3 + $0x2] sm:$0x1] 0.0
          %235 = vst [vmem:[#allocation3 + $0x3] sm:$0x1] 0.0
          %236 = vst [vmem:[#allocation4] sm:$0x1] 0.0
          %237 = vst [vmem:[#allocation4 + $0x1] sm:$0x1] 0.0
          %238 = vst [vmem:[#allocation4 + $0x2] sm:$0x1] 0.0
          %239 = vst [vmem:[#allocation4 + $0x3] sm:$0x1] 0.0
        $region40: #{tpu_custom_call.1} parent=27 // pred_fallthru
          _
        %v240 = vld [vmem:[%s193] sm:$0xff]
        %v241 = vld [vmem:[%s193 + $0x8] sm:$0xff]
        %v242 = vld [vmem:[%s184] sm:$0xff]
        %v243 = vld [vmem:[%s184 + $0x8] sm:$0xff]
        %s244 = scalar_lea.vmem %s184, 16 [#allocation5]
        %v245 = vld [vmem:[%s244] sm:$0xff]
        %v246 = vld [vmem:[%s244 + $0x8] sm:$0xff]
        %s247 = scalar_lea.vmem %s184, 32 [#allocation5]
        %v248 = vld [vmem:[%s247] sm:$0xff]
        %v249 = vld [vmem:[%s247 + $0x8] sm:$0xff]
        %s250 = scalar_lea.vmem %s184, 48 [#allocation5]
        %v251 = vld [vmem:[%s250] sm:$0xff]
        %v252 = vld [vmem:[%s250 + $0x8] sm:$0xff]
        %v253 = vmax.f32 %v242, %v245
        %v254 = vmax.f32 %v243, %v246
        %v255 = vmax.f32 %v253, %v248
        %v256 = vmax.f32 %v254, %v249
        %v257 = vmax.f32 %v255, %v251
        %v258 = vmax.f32 %v256, %v252
        %v259 = vsub.f32 %v242, %v257
        %v260 = vsub.f32 %v243, %v258
        %v261 = vmul.f32 %v259, 1.442695
        %v262 = vpow.pop %v261
        %v263 = vmul.f32 %v260, 1.442695
        %v264 = vpow.pop %v263
        %v265 = vsub.f32 %v245, %v257
        %v266 = vsub.f32 %v246, %v258
        %v267 = vmul.f32 %v265, 1.442695
        %v268 = vpow.pop %v267
        %v269 = vmul.f32 %v266, 1.442695
        %v270 = vpow.pop %v269
        %v271 = vsub.f32 %v248, %v257
        %v272 = vsub.f32 %v249, %v258
        %v273 = vmul.f32 %v271, 1.442695
        %v274 = vpow.pop %v273
        %v275 = vmul.f32 %v272, 1.442695
        %v276 = vpow.pop %v275
        %v277 = vsub.f32 %v251, %v257
        %v278 = vsub.f32 %v252, %v258
        %v279 = vmul.f32 %v277, 1.442695
        %v280 = vpow.pop %v279
        %v281 = vmul.f32 %v278, 1.442695
        %v282 = vpow.pop %v281
        %v283 = vadd.f32 %v262, %v268
        %v284 = vadd.f32 %v264, %v270
        %v285 = vadd.f32 %v283, %v274
        %v286 = vadd.f32 %v284, %v276
        %v287 = vadd.f32 %v285, %v280
        %v288 = vadd.f32 %v286, %v282
        %v289 = vrcp.pop %v287
        %v290 = vrcp.pop %v288
        %v291 = vmul.f32 %v262, %v289
        %v292 = vmul.f32 %v264, %v290
        %v293 = vmul.f32 %v268, %v289
        %v294 = vmul.f32 %v270, %v290
        %v295 = vmul.f32 %v274, %v289
        %v296 = vmul.f32 %v276, %v290
        %v297 = vmul.f32 %v280, %v289
        %v298 = vmul.f32 %v282, %v290
        %vm299 = vcmp.eq.s32.totalorder %v240, 0
        %vm300 = vcmp.eq.s32.totalorder %v241, 0
        %v301 = vsel %vm299, %v291, 0.0
        %v302 = vsel %vm300, %v292, 0.0
        %v303 = vsel %vm299, 1, 0
        %v304 = vsel %vm300, 1, 0
        %v305 = vcvt.s32.f32 %v303
        %v306 = vcvt.s32.f32 %v304
        %v307 = vld [vmem:[#allocation2] sm:$0x1]
        %v308 = vadd.f32 %v301, %v302
        %v309 = vrot.slane %v308, 4
        %v310 = vadd.f32 %v308, %v309
        %v311 = vrot.slane %v310, 2
        %v312 = vadd.f32 %v310, %v311
        %v313 = vrot.slane %v312, 1
        %v314 = vadd.f32 %v312, %v313
        %v315 = vadd.f32 %v307, %v314
        %316 = vst [vmem:[#allocation2] sm:$0x1] %v315
        %v317 = vld [vmem:[#allocation3] sm:$0x1]
        %v318 = vadd.f32 %v291, %v292
        %v319 = vrot.slane %v318, 4
        %v320 = vadd.f32 %v318, %v319
        %v321 = vrot.slane %v320, 2
        %v322 = vadd.f32 %v320, %v321
        %v323 = vrot.slane %v322, 1
        %v324 = vadd.f32 %v322, %v323
        %v325 = vadd.f32 %v317, %v324
        %326 = vst [vmem:[#allocation3] sm:$0x1] %v325
        %v327 = vld [vmem:[#allocation4] sm:$0x1]
        %v328 = vadd.f32 %v305, %v306
        %v329 = vrot.slane %v328, 4
        %v330 = vadd.f32 %v328, %v329
        %v331 = vrot.slane %v330, 2
        %v332 = vadd.f32 %v330, %v331
        %v333 = vrot.slane %v332, 1
        %v334 = vadd.f32 %v332, %v333
        %v335 = vadd.f32 %v327, %v334
        %336 = vst [vmem:[#allocation4] sm:$0x1] %v335
        %vm337 = vcmp.eq.s32.totalorder %v240, 1
        %vm338 = vcmp.eq.s32.totalorder %v241, 1
        %v339 = vsel %vm337, %v293, 0.0
        %v340 = vsel %vm338, %v294, 0.0
        %v341 = vsel %vm337, 1, 0
        %v342 = vsel %vm338, 1, 0
        %v343 = vcvt.s32.f32 %v341
        %v344 = vcvt.s32.f32 %v342
        %s345 = scalar_lea.vmem [#allocation2], 1
        %v346 = vld [vmem:[%s345] sm:$0x1]
        %v347 = vadd.f32 %v339, %v340
        %v348 = vrot.slane %v347, 4
        %v349 = vadd.f32 %v347, %v348
        %v350 = vrot.slane %v349, 2
        %v351 = vadd.f32 %v349, %v350
        %v352 = vrot.slane %v351, 1
        %v353 = vadd.f32 %v351, %v352
        %v354 = vadd.f32 %v346, %v353
        %355 = vst [vmem:[%s345] sm:$0x1] %v354
        %s356 = scalar_lea.vmem [#allocation3], 1
        %v357 = vld [vmem:[%s356] sm:$0x1]
        %v358 = vadd.f32 %v293, %v294
        %v359 = vrot.slane %v358, 4
        %v360 = vadd.f32 %v358, %v359
        %v361 = vrot.slane %v360, 2
        %v362 = vadd.f32 %v360, %v361
        %v363 = vrot.slane %v362, 1
        %v364 = vadd.f32 %v362, %v363
        %v365 = vadd.f32 %v357, %v364
        %366 = vst [vmem:[%s356] sm:$0x1] %v365
        %s367 = scalar_lea.vmem [#allocation4], 1
        %v368 = vld [vmem:[%s367] sm:$0x1]
        %v369 = vadd.f32 %v343, %v344
        %v370 = vrot.slane %v369, 4
        %v371 = vadd.f32 %v369, %v370
        %v372 = vrot.slane %v371, 2
        %v373 = vadd.f32 %v371, %v372
        %v374 = vrot.slane %v373, 1
        %v375 = vadd.f32 %v373, %v374
        %v376 = vadd.f32 %v368, %v375
        %377 = vst [vmem:[%s367] sm:$0x1] %v376
        %vm378 = vcmp.eq.s32.totalorder %v240, 2
        %vm379 = vcmp.eq.s32.totalorder %v241, 2
        %v380 = vsel %vm378, %v295, 0.0
        %v381 = vsel %vm379, %v296, 0.0
        %v382 = vsel %vm378, 1, 0
        %v383 = vsel %vm379, 1, 0
        %v384 = vcvt.s32.f32 %v382
        %v385 = vcvt.s32.f32 %v383
        %s386 = scalar_lea.vmem [#allocation2], 2
        %v387 = vld [vmem:[%s386] sm:$0x1]
        %v388 = vadd.f32 %v380, %v381
        %v389 = vrot.slane %v388, 4
        %v390 = vadd.f32 %v388, %v389
        %v391 = vrot.slane %v390, 2
        %v392 = vadd.f32 %v390, %v391
        %v393 = vrot.slane %v392, 1
        %v394 = vadd.f32 %v392, %v393
        %v395 = vadd.f32 %v387, %v394
        %396 = vst [vmem:[%s386] sm:$0x1] %v395
        %s397 = scalar_lea.vmem [#allocation3], 2
        %v398 = vld [vmem:[%s397] sm:$0x1]
        %v399 = vadd.f32 %v295, %v296
        %v400 = vrot.slane %v399, 4
        %v401 = vadd.f32 %v399, %v400
        %v402 = vrot.slane %v401, 2
        %v403 = vadd.f32 %v401, %v402
        %v404 = vrot.slane %v403, 1
        %v405 = vadd.f32 %v403, %v404
        %v406 = vadd.f32 %v398, %v405
        %407 = vst [vmem:[%s397] sm:$0x1] %v406
        %s408 = scalar_lea.vmem [#allocation4], 2
        %v409 = vld [vmem:[%s408] sm:$0x1]
        %v410 = vadd.f32 %v384, %v385
        %v411 = vrot.slane %v410, 4
        %v412 = vadd.f32 %v410, %v411
        %v413 = vrot.slane %v412, 2
        %v414 = vadd.f32 %v412, %v413
        %v415 = vrot.slane %v414, 1
        %v416 = vadd.f32 %v414, %v415
        %v417 = vadd.f32 %v409, %v416
        %418 = vst [vmem:[%s408] sm:$0x1] %v417
        %vm419 = vcmp.eq.s32.totalorder %v240, 3
        %vm420 = vcmp.eq.s32.totalorder %v241, 3
        %v421 = vsel %vm419, %v297, 0.0
        %v422 = vsel %vm420, %v298, 0.0
        %v423 = vsel %vm419, 1, 0
        %v424 = vsel %vm420, 1, 0
        %v425 = vcvt.s32.f32 %v423
        %v426 = vcvt.s32.f32 %v424
        %s427 = scalar_lea.vmem [#allocation2], 3
        %v428 = vld [vmem:[%s427] sm:$0x1]
        %v429 = vadd.f32 %v421, %v422
        %v430 = vrot.slane %v429, 4
        %v431 = vadd.f32 %v429, %v430
        %v432 = vrot.slane %v431, 2
        %v433 = vadd.f32 %v431, %v432
        %v434 = vrot.slane %v433, 1
        %v435 = vadd.f32 %v433, %v434
        %v436 = vadd.f32 %v428, %v435
        %437 = vst [vmem:[%s427] sm:$0x1] %v436
        %s438 = scalar_lea.vmem [#allocation3], 3
        %v439 = vld [vmem:[%s438] sm:$0x1]
        %v440 = vadd.f32 %v297, %v298
        %v441 = vrot.slane %v440, 4
        %v442 = vadd.f32 %v440, %v441
        %v443 = vrot.slane %v442, 2
        %v444 = vadd.f32 %v442, %v443
        %v445 = vrot.slane %v444, 1
        %v446 = vadd.f32 %v444, %v445
        %v447 = vadd.f32 %v439, %v446
        %448 = vst [vmem:[%s438] sm:$0x1] %v447
        %s449 = scalar_lea.vmem [#allocation4], 3
        %v450 = vld [vmem:[%s449] sm:$0x1]
        %v451 = vadd.f32 %v425, %v426
        %v452 = vrot.slane %v451, 4
        %v453 = vadd.f32 %v451, %v452
        %v454 = vrot.slane %v453, 2
        %v455 = vadd.f32 %v453, %v454
        %v456 = vrot.slane %v455, 1
        %v457 = vadd.f32 %v455, %v456
        %v458 = vadd.f32 %v450, %v457
        %459 = vst [vmem:[%s449] sm:$0x1] %v458
        // Predicated region
        $region41: #{tpu_custom_call.1} parent=27 // pred_check
          %p460 = pneg %p224
        $region42: #{tpu_custom_call.1} parent=27 // pred_check_branch
          %462 = sbr.rel (%p460) target = $region44
        $region43: #{tpu_custom_call.1} parent=27 // pred_region
          %v463 = vld [vmem:[#allocation2] sm:$0x1]
          %v464 = vld [vmem:[#allocation2 + $0x1] sm:$0x1]
          %v465 = vld [vmem:[#allocation2 + $0x2] sm:$0x1]
          %v466 = vld [vmem:[#allocation2 + $0x3] sm:$0x1]
          %vm467 = vcmask 1040384
          %v468 = vsel %vm467, %v463, 0.0
          %469 = vadd.xlane.f32.xlu0 %v468
          %v470 = vpop.xlane.xlu0 %469
          %v471 = vsel %vm467, %v464, 0.0
          %472 = vadd.xlane.f32.xlu0 %v471
          %v473 = vpop.xlane.xlu0 %472
          %v474 = vsel %vm467, %v465, 0.0
          %475 = vadd.xlane.f32.xlu0 %v474
          %v476 = vpop.xlane.xlu0 %475
          %v477 = vsel %vm467, %v466, 0.0
          %478 = vadd.xlane.f32.xlu0 %v477
          %v479 = vpop.xlane.xlu0 %478
          %v480 = vld [vmem:[#allocation3] sm:$0x1]
          %v481 = vld [vmem:[#allocation3 + $0x1] sm:$0x1]
          %v482 = vld [vmem:[#allocation3 + $0x2] sm:$0x1]
          %v483 = vld [vmem:[#allocation3 + $0x3] sm:$0x1]
          %v484 = vsel %vm467, %v480, 0.0
          %485 = vadd.xlane.f32.xlu0 %v484
          %v486 = vpop.xlane.xlu0 %485
          %v487 = vsel %vm467, %v481, 0.0
          %488 = vadd.xlane.f32.xlu0 %v487
          %v489 = vpop.xlane.xlu0 %488
          %v490 = vsel %vm467, %v482, 0.0
          %491 = vadd.xlane.f32.xlu0 %v490
          %v492 = vpop.xlane.xlu0 %491
          %v493 = vsel %vm467, %v483, 0.0
          %494 = vadd.xlane.f32.xlu0 %v493
          %v495 = vpop.xlane.xlu0 %494
          %v496 = vld [vmem:[#allocation4] sm:$0x1]
          %v497 = vld [vmem:[#allocation4 + $0x1] sm:$0x1]
          %v498 = vld [vmem:[#allocation4 + $0x2] sm:$0x1]
          %v499 = vld [vmem:[#allocation4 + $0x3] sm:$0x1]
          %v500 = vsel %vm467, %v496, 0.0
          %501 = vadd.xlane.f32.xlu0 %v500
          %v502 = vpop.xlane.xlu0 %501
          %v503 = vsel %vm467, %v497, 0.0
          %504 = vadd.xlane.f32.xlu0 %v503
          %v505 = vpop.xlane.xlu0 %504
          %v506 = vsel %vm467, %v498, 0.0
          %507 = vadd.xlane.f32.xlu0 %v506
          %v508 = vpop.xlane.xlu0 %507
          %v509 = vsel %vm467, %v499, 0.0
          %510 = vadd.xlane.f32.xlu0 %v509
          %v511 = vpop.xlane.xlu0 %510
          %v512 = vsub.f32 %v486, 448.0
          %v513 = vsub.f32 %v489, 448.0
          %v514 = vsub.f32 %v492, 448.0
          %v515 = vsub.f32 %v495, 448.0
          %v516 = vmul.f32 %v470, 2.0
          %v517 = vmul.f32 %v473, 2.0
          %v518 = vmul.f32 %v476, 2.0
          %v519 = vmul.f32 %v479, 2.0
          %v520 = vadd.f32 %v516, 1e-06
          %v521 = vadd.f32 %v517, 1e-06
          %v522 = vadd.f32 %v518, 1e-06
          %v523 = vadd.f32 %v519, 1e-06
          %v524 = vadd.f32 %v512, %v502
          %v525 = vadd.f32 %v513, %v505
          %v526 = vadd.f32 %v514, %v508
          %v527 = vadd.f32 %v515, %v511
          %v528 = vadd.f32 %v524, 1e-06
          %v529 = vadd.f32 %v525, 1e-06
          %v530 = vadd.f32 %v526, 1e-06
          %v531 = vadd.f32 %v527, 1e-06
          %v532 = vrcp.pop %v528
          %v533 = vmul.f32 %v520, %v532
          %v534 = vrcp.pop %v529
          %v535 = vmul.f32 %v521, %v534
          %v536 = vrcp.pop %v530
          %v537 = vmul.f32 %v522, %v536
          %v538 = vrcp.pop %v531
          %v539 = vmul.f32 %v523, %v538
          %v544 = vrot.slane %v535, 7
          %vm545 = vcmask 1041409
          %v546 = vsel %vm545, %v544, %v533
          %v547 = vrot.slane %v537, 6
          %vm548 = vcmask 1042434
          %v549 = vsel %vm548, %v547, %v546
          %v550 = vrot.slane %v539, 5
          %vm551 = vcmask 1043459
          %v552 = vsel %vm551, %v550, %v549
          %vm554 = vcmask 3072
          %555 = vst.msk [vmem:[%s223] sm:$0xf] %vm554, %v552
        $region44: #{tpu_custom_call.1} parent=27 // pred_fallthru
          _
        %p556 = scmp.lt.s32.totalorder %s23, 1
        %s557 = scalar_select %p556, %s23, 1
        %s558 = smul.addr %s557, 4
        %s559 = scalar_lea.vmem %s2, %s558
        // Predicated region
        $region45: #{tpu_custom_call.1} parent=27 // pred_check
          %p560 = pneg %p105
        $region46: #{tpu_custom_call.1} parent=27 // pred_check_branch
          %562 = sbr.rel (%p560) target = $region48
        $region47: #{tpu_custom_call.1} parent=27 // pred_region
          _
        $region48: #{tpu_custom_call.1} parent=27 // pred_fallthru
          _
      $region28: #{tpu_custom_call.1} parent=5 // pred_fallthru
        _
      %p563 = scmp.le.s32.totalorder 2, %s14
      // Predicated region
      $region49: #{tpu_custom_call.1} parent=5 // pred_check
        %p564 = pneg %p563
      $region50: #{tpu_custom_call.1} parent=5 // pred_check_branch
        %566 = sbr.rel (%p564) target = $region52
      $region51: #{tpu_custom_call.1} parent=5 // pred_region
        %s567 = ssub.s32 %s14, 2
        // Predicated region
        $region53: #{tpu_custom_call.1} parent=51 // pred_check
          %p568 = pneg %p111
        $region54: #{tpu_custom_call.1} parent=51 // pred_check_branch
          %570 = sbr.rel (%p568) target = $region56
        $region55: #{tpu_custom_call.1} parent=51 // pred_region
          %p571 = scmp.lt.s32.totalorder %s25, 1
          %s572 = scalar_select %p571, %s25, 1
          %s573 = smul.addr %s572, 4
          %s574 = scalar_lea.vmem %s2, %s573
        $region56: #{tpu_custom_call.1} parent=51 // pred_fallthru
          _
      $region52: #{tpu_custom_call.1} parent=5 // pred_fallthru
        _
    $region6: #{tpu_custom_call.1} parent=1 // loop_footer
      %s18 = sadd.s32 1, %s14
    $region7: #{tpu_custom_call.1} parent=1 // loop_footer_branch
      %13 = sbr.rel target = $region3
    $region8: #{tpu_custom_call.1} parent=1 // loop_exit
      _
    %575 = vsyncpa [#allocation6], 1
    %s576 = scalar_lea.sflag [#allocation6], 1
    %577 = vsyncpa %s576, 1
    %578 = vsyncpa [#allocation8], 1
    %s579 = scalar_lea.sflag [#allocation8], 1
    %580 = vsyncpa %s579, 1

</llo_original>
